<compile_context>
chip_gen: v7x
topology: tpu7x:2x2x1
jax: 0.10.0
libtpu: 0.0.40
codegen_flags: <defaults>
</compile_context>

<pallas_src>
import numpy as np
import jax
import jax.numpy as jnp
from jax.experimental import pallas as pl
from jax.experimental.pallas import tpu as pltpu


# ---------------------------------------------------------------------------
# Pallas kernels
# ---------------------------------------------------------------------------

def _stft_logmag_kernel(frames_ref, basis_ref, out_ref):
    # frames: (bm, n_fft); basis: (n_fft, 2*Fpad) = [win*cos | -win*sin] zero-padded to
    # 128-multiples; out: (bm, Fpad) lane-dense log1p-magnitude.
    fp = out_ref.shape[-1]
    y = jnp.dot(frames_ref[...], basis_ref[...], preferred_element_type=jnp.float32)
    re = y[:, :fp]
    im = y[:, fp:]
    out_ref[...] = jnp.log1p(jnp.sqrt(re * re + im * im))


def _moments_kernel(x_ref, out_ref):
    # x: (B, L) -> out: (B, 4) = [mean, m2, m3, m4] written with a single packed store.
    x = x_ref[...]
    n = x.shape[1]
    inv_n = 1.0 / n
    mean = jnp.sum(x, axis=1, keepdims=True) * inv_n
    d = x - mean
    d2 = d * d
    m2 = jnp.sum(d2, axis=1, keepdims=True) * inv_n
    m3 = jnp.sum(d2 * d, axis=1, keepdims=True) * inv_n
    m4 = jnp.sum(d2 * d2, axis=1, keepdims=True) * inv_n
    out_ref[...] = jnp.concatenate([mean, m2, m3, m4], axis=1)


def _conv_gru_head_kernel(spec_ref, w1_ref, s1_ref, t1_ref,
                          w2_ref, s2_ref, t2_ref,
                          wih_ref, bih_ref, whh_ref, bhh_ref,
                          feat_ref, wh_ref, wf_ref, fcb_ref,
                          out_ref, p1pad_ref):
    # Per-batch fused: conv1(3x3,Cin=1)+BN+ReLU+pool1 -> conv2(3x3)+BN+ReLU+pool2
    #                  -> GRU input projection (hoisted) -> GRU recurrence -> FC head.
    # spec_ref: (F+2, T+2, 1) zero-padded log-magnitude spectrogram (one batch element).
    Fp, Tp, _ = spec_ref.shape
    F, T = Fp - 2, Tp - 2
    F1, T1 = F // 2, T // 2
    F2, T2 = F1 // 2, T1 // 2
    C1 = w1_ref.shape[1]                     # 16
    C2 = w2_ref.shape[2]                     # 32
    H = whh_ref.shape[0]                     # 64

    x = spec_ref[...]                        # (F+2, T+2, 1)

    # ---- conv1: 9 broadcast FMAs on the VPU (Cin=1, so no MXU needed) ----
    y1 = jnp.zeros((F, T, C1), jnp.float32)
    for k in range(9):
        ky, kx = divmod(k, 3)
        y1 = y1 + x[ky:ky + F, kx:kx + T, :] * w1_ref[k]        # (F,T,1)*(C1,) -> (F,T,C1)
    y1 = jnp.maximum(y1 * s1_ref[...] + t1_ref[...], 0.0)       # folded BN + ReLU

    # ---- maxpool1 (2x2, floor) fused in-kernel ----
    p1 = jnp.max(y1[:2 * F1, :2 * T1, :].reshape(F1, 2, T1, 2, C1), axis=(1, 3))

    # ---- conv2: in-kernel im2col via zero-padded VMEM scratch + 9 small dots ----
    p1pad_ref[...] = jnp.zeros(p1pad_ref.shape, p1pad_ref.dtype)
    p1pad_ref[1:F1 + 1, 1:T1 + 1, :] = p1
    y2 = jnp.zeros((F1 * T1, C2), jnp.float32)
    for k in range(9):
        ky, kx = divmod(k, 3)
        tap = p1pad_ref[ky:ky + F1, kx:kx + T1, :]               # (F1, T1, C1)
        y2 = y2 + jnp.dot(tap.reshape(F1 * T1, C1), w2_ref[k],
                          preferred_element_type=jnp.float32)    # (F1*T1, C2)
    y2 = jnp.maximum(y2 * s2_ref[...] + t2_ref[...], 0.0)

    # ---- maxpool2 ----
    p2 = jnp.max(y2.reshape(F1, T1, C2)[:2 * F2, :2 * T2, :]
                 .reshape(F2, 2, T2, 2, C2), axis=(1, 3))        # (F2, T2, C2)

    # ---- GRU input projection hoisted out of the recurrence ----
    # gi[t, :] = sum_{f,c} p2[f, t, c] * Wih[:, c*F2 + f] + bih  (Wih columns pre-permuted)
    gi = bih_ref[...]                                            # (1, 3H)
    for f in range(F2):
        gi = gi + jnp.dot(p2[f], wih_ref[f], preferred_element_type=jnp.float32)
    # gi: (T2, 3H)

    # ---- GRU recurrence (statically unrolled; only h @ Whh.T per step) ----
    h = jnp.zeros((1, H), jnp.float32)
    for t in range(T2):
        gh = jnp.dot(h, whh_ref[...], preferred_element_type=jnp.float32) + bhh_ref[...]
        gi_t = gi[t:t + 1]                                       # (1, 3H)
        r = jax.nn.sigmoid(gi_t[:, 0:H] + gh[:, 0:H])
        z = jax.nn.sigmoid(gi_t[:, H:2 * H] + gh[:, H:2 * H])
        n = jnp.tanh(gi_t[:, 2 * H:3 * H] + r * gh[:, 2 * H:3 * H])
        h = (1.0 - z) * n + z * h

    # ---- fused FC head (concat-free split matmul) ----
    out_ref[...] = (jnp.dot(h, wh_ref[...], preferred_element_type=jnp.float32)
                    + jnp.dot(feat_ref[...], wf_ref[...], preferred_element_type=jnp.float32)
                    + fcb_ref[...])


# ---------------------------------------------------------------------------
# Wrappers (glue in plain JAX)
# ---------------------------------------------------------------------------

def stft_log_magnitude(x, prep):
    """torch.stft(center=True, reflect pad, periodic Hann, onesided) -> log1p(|S|)."""
    n_fft, hop = prep["n_fft"], prep["hop_length"]
    B, L = x.shape
    if L < n_fft:
        x = jnp.pad(x, ((0, 0), (0, n_fft - L)))
        L = n_fft
    pad = n_fft // 2
    xp = jnp.pad(x, ((0, 0), (pad, pad)), mode="reflect")
    n_frames = 1 + (xp.shape[1] - n_fft) // hop
    idx = np.arange(n_frames)[:, None] * hop + np.arange(n_fft)[None, :]
    frames = xp[:, idx].reshape(B * n_frames, n_fft).astype(jnp.float32)

    M = B * n_frames
    bm = min(512, ((M + 7) // 8) * 8)                  # row-block, multiple of 8
    Mp = ((M + bm - 1) // bm) * bm
    if Mp > M:
        frames = jnp.pad(frames, ((0, Mp - M), (0, 0)))
    fpad = prep["stft_fpad"]
    fbins = prep["fbins"]

    mag = pl.pallas_call(
        _stft_logmag_kernel,
        grid=(Mp // bm,),
        in_specs=[
            pl.BlockSpec((bm, n_fft), lambda i: (i, 0)),
            pl.BlockSpec((n_fft, 2 * fpad), lambda i: (0, 0)),
        ],
        out_specs=pl.BlockSpec((bm, fpad), lambda i: (i, 0)),
        out_shape=jax.ShapeDtypeStruct((Mp, fpad), jnp.float32),
        compiler_params=pltpu.CompilerParams(
            dimension_semantics=("parallel",),
            vmem_limit_bytes=32 * 1024 * 1024),
    )(frames, prep["stft_basis"])
    return mag[:M, :fbins].reshape(B, n_frames, fbins).transpose(0, 2, 1)   # (B, F, T)


def handcrafted_features(x):
    """[skew(pandas), kurtosis(pandas), IQR, autocorr peak lag, autocorr peak value]."""
    B, L = x.shape
    mom = pl.pallas_call(
        _moments_kernel,
        out_shape=jax.ShapeDtypeStruct((B, 4), jnp.float32),
    )(x.astype(jnp.float32))
    m2, m3, m4 = mom[:, 1], mom[:, 2], mom[:, 3]
    n = float(L)
    skew = jnp.sqrt(n * (n - 1.0)) / (n - 2.0) * m3 / (m2 ** 1.5)
    kurt = (n - 1.0) / ((n - 2.0) * (n - 3.0)) * ((n + 1.0) * m4 / (m2 ** 2) - 3.0 * (n - 1.0))
    q75 = jnp.percentile(x, 75.0, axis=1)
    q25 = jnp.percentile(x, 25.0, axis=1)
    iqr = q75 - q25

    # TODO(synk): percentile + full autocorrelation peak search stay in plain JAX glue
    # (sort / argmax-gather heavy, no clean Pallas equivalent at these sizes).
    def _ac(sig):
        ac = jnp.correlate(sig, sig, mode="full")
        ac = ac / jnp.max(ac)
        center = L - 1
        start = center + 50                            # exclusion_window = 50
        part = ac[start:]
        rel = jnp.argmax(part)
        idxp = start + rel
        return (idxp - center).astype(jnp.float32), ac[idxp]

    lags, vals = jax.vmap(_ac)(x)
    return jnp.stack([skew, kurt, iqr, lags, vals], axis=1)      # (B, 5)


def conv_gru_head(spec, feats_bn, prep):
    """Fused conv1+pool1+conv2+pool2+GRU+FC head, grid over batch ('parallel')."""
    B, F, T = spec.shape
    F1, T1 = F // 2, T // 2
    F2 = F1 // 2
    C1 = prep["w1"].shape[1]
    C2 = prep["w2"].shape[2]
    H = prep["whh_T"].shape[0]
    threeH = prep["whh_T"].shape[1]
    nc = prep["fc_b"].shape[1]

    specpad = jnp.pad(spec, ((0, 0), (1, 1), (1, 1)))[..., None]   # (B, F+2, T+2, 1)

    return pl.pallas_call(
        _conv_gru_head_kernel,
        grid=(B,),
        in_specs=[
            pl.BlockSpec((None, F + 2, T + 2, 1), lambda b: (b, 0, 0, 0)),
            pl.BlockSpec((9, C1), lambda b: (0, 0)),
            pl.BlockSpec((1, C1), lambda b: (0, 0)),
            pl.BlockSpec((1, C1), lambda b: (0, 0)),
            pl.BlockSpec((9, C1, C2), lambda b: (0, 0, 0)),
            pl.BlockSpec((1, C2), lambda b: (0, 0)),
            pl.BlockSpec((1, C2), lambda b: (0, 0)),
            pl.BlockSpec((F2, C2, threeH), lambda b: (0, 0, 0)),
            pl.BlockSpec((1, threeH), lambda b: (0, 0)),
            pl.BlockSpec((H, threeH), lambda b: (0, 0)),
            pl.BlockSpec((1, threeH), lambda b: (0, 0)),
            pl.BlockSpec((1, 5), lambda b: (b, 0)),
            pl.BlockSpec((H, nc), lambda b: (0, 0)),
            pl.BlockSpec((5, nc), lambda b: (0, 0)),
            pl.BlockSpec((1, nc), lambda b: (0, 0)),
        ],
        out_specs=pl.BlockSpec((1, nc), lambda b: (b, 0)),
        out_shape=jax.ShapeDtypeStruct((B, nc), jnp.float32),
        scratch_shapes=[pltpu.VMEM((F1 + 2, T1 + 2, C1), jnp.float32)],
        compiler_params=pltpu.CompilerParams(dimension_semantics=("parallel",)),
    )(specpad, prep["w1"], prep["s1"], prep["t1"],
      prep["w2"], prep["s2"], prep["t2"],
      prep["wih_re"], prep["bih"], prep["whh_T"], prep["bhh"],
      feats_bn, prep["wh"], prep["wf"], prep["fc_b"])


def forward(prep, x, lengths):
    # eval-mode forward: Dropout and SpecAugment are identity (training-only).
    del lengths                                                   # unused by the reference forward
    feats = handcrafted_features(x)                               # (B, 5)
    feats_bn = (feats * prep["hbn_scale"] + prep["hbn_shift"]).astype(jnp.float32)
    spec = stft_log_magnitude(x, prep)                            # (B, F, T)
    return conv_gru_head(spec, feats_bn, prep)                    # (B, n_classes)


# ---------------------------------------------------------------------------
# Parameter init + one-time preprocessing of constants
# ---------------------------------------------------------------------------

def init_params(key, n_classes=4, n_fft=64):
    fbins = n_fft // 2 + 1
    input_size = 32 * (fbins // 4)          # _compute_input_size
    H = 64
    ks = jax.random.split(key, 8)
    f32 = jnp.float32
    return {
        "conv1_w": 0.2 * jax.random.normal(ks[0], (3, 3, 1, 16), f32),
        "conv1_b": 0.1 * jax.random.normal(ks[1], (16,), f32),
        "bn1_gamma": jnp.ones((16,), f32), "bn1_beta": jnp.zeros((16,), f32),
        "bn1_mean": jnp.zeros((16,), f32), "bn1_var": jnp.ones((16,), f32),
        "conv2_w": 0.1 * jax.random.normal(ks[2], (3, 3, 16, 32), f32),
        "conv2_b": 0.1 * jax.random.normal(ks[3], (32,), f32),
        "bn2_gamma": jnp.ones((32,), f32), "bn2_beta": jnp.zeros((32,), f32),
        "bn2_mean": jnp.zeros((32,), f32), "bn2_var": jnp.ones((32,), f32),
        "gru_wih": 0.05 * jax.random.normal(ks[4], (3 * H, input_size), f32),
        "gru_whh": 0.05 * jax.random.normal(ks[5], (3 * H, H), f32),
        "gru_bih": jnp.zeros((3 * H,), f32),
        "gru_bhh": jnp.zeros((3 * H,), f32),
        "hbn_gamma": jnp.ones((5,), f32), "hbn_beta": jnp.zeros((5,), f32),
        "hbn_mean": jnp.zeros((5,), f32), "hbn_var": jnp.ones((5,), f32),
        "fc_w": 0.1 * jax.random.normal(ks[6], (n_classes, H + 5), f32),
        "fc_b": 0.1 * jax.random.normal(ks[7], (n_classes,), f32),
    }


def prepare_params(params, n_fft, hop_length, eps=1e-5):
    """One-time constant folding: STFT basis, folded BN, reshaped/permuted weights."""
    fbins = n_fft // 2 + 1
    F2 = (fbins // 2) // 2
    H = params["gru_whh"].shape[1]
    C1 = params["conv1_w"].shape[-1]
    C2 = params["conv2_w"].shape[-1]
    D = params["gru_wih"].shape[1]
    assert D == C2 * F2, (D, C2, F2)
    nc = params["fc_w"].shape[0]

    # fused (cos | -sin) STFT basis, lane-padded to a multiple of 128
    n = np.arange(n_fft)
    window = 0.5 - 0.5 * np.cos(2.0 * np.pi * n / n_fft)          # periodic Hann
    ang = 2.0 * np.pi * np.outer(n, np.arange(fbins)) / n_fft
    fpad = ((fbins + 127) // 128) * 128
    cos_b = np.zeros((n_fft, fpad), np.float32)
    sin_b = np.zeros((n_fft, fpad), np.float32)
    cos_b[:, :fbins] = window[:, None] * np.cos(ang)
    sin_b[:, :fbins] = -window[:, None] * np.sin(ang)
    basis = jnp.asarray(np.concatenate([cos_b, sin_b], axis=1), jnp.float32)

    # folded BatchNorm (eval) scale/shift including conv bias
    s1 = params["bn1_gamma"] / jnp.sqrt(params["bn1_var"] + eps)
    t1 = params["bn1_beta"] + (params["conv1_b"] - params["bn1_mean"]) * s1
    s2 = params["bn2_gamma"] / jnp.sqrt(params["bn2_var"] + eps)
    t2 = params["bn2_beta"] + (params["conv2_b"] - params["bn2_mean"]) * s2
    hs = params["hbn_gamma"] / jnp.sqrt(params["hbn_var"] + eps)
    ht = params["hbn_beta"] - params["hbn_mean"] * hs

    # Wih columns permuted to match the kernel's (f-major, c-minor) flattening:
    # wih_re[f, c, :] = Wih[:, c*F2 + f]
    wih_re = params["gru_wih"].reshape(3 * H, C2, F2).transpose(2, 1, 0)

    return {
        "n_fft": n_fft, "hop_length": hop_length,
        "stft_basis": basis, "stft_fpad": fpad, "fbins": fbins,
        "w1": params["conv1_w"].reshape(9, C1).astype(jnp.float32),
        "s1": s1.reshape(1, C1).astype(jnp.float32),
        "t1": t1.reshape(1, C1).astype(jnp.float32),
        "w2": params["conv2_w"].reshape(9, params["conv2_w"].shape[2], C2).astype(jnp.float32),
        "s2": s2.reshape(1, C2).astype(jnp.float32),
        "t2": t2.reshape(1, C2).astype(jnp.float32),
        "wih_re": wih_re.astype(jnp.float32),
        "bih": params["gru_bih"].reshape(1, 3 * H).astype(jnp.float32),
        "whh_T": params["gru_whh"].T.astype(jnp.float32),
        "bhh": params["gru_bhh"].reshape(1, 3 * H).astype(jnp.float32),
        "hbn_scale": hs.reshape(1, 5).astype(jnp.float32),
        "hbn_shift": ht.reshape(1, 5).astype(jnp.float32),
        "wh": params["fc_w"][:, :H].T.astype(jnp.float32),
        "wf": params["fc_w"][:, H:].T.astype(jnp.float32),
        "fc_b": params["fc_b"].reshape(1, nc).astype(jnp.float32),
    }


if __name__ == "__main__":
    key = jax.random.PRNGKey(0)
    pkey, xkey = jax.random.split(key)

    # Small shapes: batch=2, signal length=256, n_fft=64, hop=32 -> freq_bins=33, frames=9
    n_classes, n_fft, hop = 4, 64, 32
    B, L = 2, 256
    params = init_params(pkey, n_classes=n_classes, n_fft=n_fft)
    prep = prepare_params(params, n_fft=n_fft, hop_length=hop)

    x = jax.random.normal(xkey, (B, L), jnp.float32)
    x = (x - x.mean(axis=1, keepdims=True)) / x.std(axis=1, keepdims=True)  # amplitude-normalized
    lengths = jnp.full((B,), L, jnp.int32)

    out = forward(prep, x, lengths)
    out = jax.block_until_ready(out)
    assert out.shape == (B, n_classes), out.shape
    print("KERNEL_OK")
</pallas_src>

<mosaic_0001>
module attributes {stable_mosaic.version = 11 : i64} {
  func.func @_moments_kernel(%arg0: memref<2x256xf32, #tpu.memory_space<vmem>>, %arg1: memref<2x4xf32, #tpu.memory_space<vmem>>) attributes {dimension_semantics = [], scalar_prefetch = 0 : i64, scratch_operands = 0 : i64, tpu.core_type = #tpu.core_type<tc>} {
    %c0 = arith.constant 0 : index
    %c0_0 = arith.constant 0 : index
    %0 = vector.load %arg0[%c0, %c0_0] : memref<2x256xf32, #tpu.memory_space<vmem>>, vector<2x256xf32>
    %cst = arith.constant dense<0.000000e+00> : vector<2xf32>
    %1 = vector.multi_reduction <add>, %0, %cst [1] : vector<2x256xf32> to vector<2xf32>
    %2 = vector.shape_cast %1 : vector<2xf32> to vector<2x1xf32>
    %cst_1 = arith.constant 3.906250e-03 : f32
    %3 = vector.broadcast %cst_1 : f32 to vector<2x1xf32>
    %4 = arith.mulf %2, %3 : vector<2x1xf32>
    %5 = vector.broadcast %4 : vector<2x1xf32> to vector<2x256xf32>
    %6 = arith.subf %0, %5 : vector<2x256xf32>
    %7 = arith.mulf %6, %6 : vector<2x256xf32>
    %cst_2 = arith.constant dense<0.000000e+00> : vector<2xf32>
    %8 = vector.multi_reduction <add>, %7, %cst_2 [1] : vector<2x256xf32> to vector<2xf32>
    %9 = vector.shape_cast %8 : vector<2xf32> to vector<2x1xf32>
    %cst_3 = arith.constant 3.906250e-03 : f32
    %10 = vector.broadcast %cst_3 : f32 to vector<2x1xf32>
    %11 = arith.mulf %9, %10 : vector<2x1xf32>
    %12 = arith.mulf %7, %6 : vector<2x256xf32>
    %cst_4 = arith.constant dense<0.000000e+00> : vector<2xf32>
    %13 = vector.multi_reduction <add>, %12, %cst_4 [1] : vector<2x256xf32> to vector<2xf32>
    %14 = vector.shape_cast %13 : vector<2xf32> to vector<2x1xf32>
    %cst_5 = arith.constant 3.906250e-03 : f32
    %15 = vector.broadcast %cst_5 : f32 to vector<2x1xf32>
    %16 = arith.mulf %14, %15 : vector<2x1xf32>
    %17 = arith.mulf %7, %7 : vector<2x256xf32>
    %cst_6 = arith.constant dense<0.000000e+00> : vector<2xf32>
    %18 = vector.multi_reduction <add>, %17, %cst_6 [1] : vector<2x256xf32> to vector<2xf32>
    %19 = vector.shape_cast %18 : vector<2xf32> to vector<2x1xf32>
    %cst_7 = arith.constant 3.906250e-03 : f32
    %20 = vector.broadcast %cst_7 : f32 to vector<2x1xf32>
    %21 = arith.mulf %19, %20 : vector<2x1xf32>
    %22 = tpu.concatenate %4, %11, %16, %21 in 1 : vector<2x1xf32>, vector<2x1xf32>, vector<2x1xf32>, vector<2x1xf32> -> vector<2x4xf32>
    %c0_8 = arith.constant 0 : index
    %c0_9 = arith.constant 0 : index
    %23 = vector.load %arg1[%c0_8, %c0_9] : memref<2x4xf32, #tpu.memory_space<vmem>>, vector<2x4xf32>
    tpu.vector_store %arg1[%c0_8, %c0_9], %22 {strides = array<i32>} : memref<2x4xf32, #tpu.memory_space<vmem>>, vector<2x4xf32>,
    return
  }
}

</mosaic_0001>

<llo_original>
// kernel: tpu_custom_call.1
$region0: #{tpu_custom_call.1}
  #allocation0 [shape = 'u32[]', space=smem, size = 0x4, offset = 0x4, fixed_abs, tag = 'smem constant byte address 0x4 - core index']
  #allocation1 [shape = 'u32[144,128]{1,0:T(1,128)}', space=vmem, size = 0x12000, scoped, tag = 'internal scratch']
  %s0 = inlined_call_operand.hbm [shape: f32[2,256], index: 0, kind: input, shape index: {}]
  %s1 = inlined_call_operand.hbm [shape: f32[2,4], index: 1, kind: output, shape index: {}]
  %s2 = sld [smem:[#allocation0]]
  $region18: #{tpu_custom_call.1} parent=0
    _
  %s4 = ssub.s32 1, %s2
  %s5 = scalar_select 0, %s4, %s2
  $region1: #{tpu_custom_call.1} parent=0
    #allocation2 [shape = 'u8[2048]{0}', space=vmem, size = 0x800, scoped, tag = 'input window, operand 0, single buffered']
    #allocation3 [shape = 's32[1]{0}', space=sflag, size = 0x4, scoped, tag = 'scoped memory for tpu_custom_call.1']
    #allocation4 [shape = 's32[1]{0}', space=sflag, size = 0x4, scoped, tag = 'scoped memory for tpu_custom_call.1']
    #allocation5 [shape = 'u8[1024]{0}', space=vmem, size = 0x400, scoped, tag = 'output window, operand 0, single buffered']
    %6 = vsyncpa [#allocation3], 0
    %7 = vsyncpa [#allocation4], 0
    // Predicated region
    $region2: #{tpu_custom_call.1} parent=1 // pred_check
      _
    $region3: #{tpu_custom_call.1} parent=1 // pred_check_branch
      %9 = sbr.rel (0) target = $region5
    $region4: #{tpu_custom_call.1} parent=1 // pred_region
      %s11 = ssub.s32 64, 64
      %12 = vsyncadd [#allocation3], %s11
      %s14 = sshll.u32 [#allocation2], 4
      %s15 = int_to_ptr.vmem [resolvable:$true] %s14
      %17 = dma.hbm_to_vmem [thread:$0]  %s0, 64, %s15, [#allocation3]
    $region5: #{tpu_custom_call.1} parent=1 // pred_fallthru
      _
    // Predicated region
    $region6: #{tpu_custom_call.1} parent=1 // pred_check
      _
    $region7: #{tpu_custom_call.1} parent=1 // pred_check_branch
      %19 = sbr.rel (0) target = $region9
    $region8: #{tpu_custom_call.1} parent=1 // pred_region
      %20 = dma.done [#allocation3], 64
    $region9: #{tpu_custom_call.1} parent=1 // pred_fallthru
      _
    %v21 = vld [vmem:[#allocation2] sm:$0xf]
    %v24 = vunpack.c.l.s4 1983009808
    %v25 = vunpack.c.0.s8 %v24
    %v26 = vlaneseq
    %v27 = vshrl.u32 %v26, 7
    %v28 = vsub.s32 %v25, %v27
    %v29 = vrot.slane %v21, %v28
    %v30 = vcombine.high %v29, %v29
    %vm33 = vcmask 1041408
    %v34 = vsel %vm33, %v29, 0.0
    %v35 = vsel %vm33, %v30, 0.0
    %v36 = vadd.f32 %v34, %v35
    %37 = vadd.xlane.f32.xlu0 %v36
    %v38 = vpop.xlane.xlu0 %37
    %v39 = vmul.f32 %v38, 0.00390625
    %v42 = vunpack.c.l.s4 269488144
    %v43 = vunpack.c.0.s8 %v42
    %v44 = vlaneseq
    %v45 = vshrl.u32 %v44, 7
    %v46 = vsub.s32 %v43, %v45
    %v47 = vrot.slane %v39, %v46
    %v49 = vsub.f32 %v21, %v47
    %v50 = vmul.f32 %v49, %v49
    %v53 = vunpack.c.l.s4 1983009808
    %v54 = vunpack.c.0.s8 %v53
    %v55 = vlaneseq
    %v56 = vshrl.u32 %v55, 7
    %v57 = vsub.s32 %v54, %v56
    %v58 = vrot.slane %v50, %v57
    %v59 = vcombine.high %v58, %v58
    %v62 = vsel %vm33, %v58, 0.0
    %v63 = vsel %vm33, %v59, 0.0
    %v64 = vadd.f32 %v62, %v63
    %65 = vadd.xlane.f32.xlu0 %v64
    %v66 = vpop.xlane.xlu0 %65
    %v67 = vmul.f32 %v66, 0.00390625
    %v68 = vmul.f32 %v50, %v49
    %v71 = vunpack.c.l.s4 1983009808
    %v72 = vunpack.c.0.s8 %v71
    %v73 = vlaneseq
    %v74 = vshrl.u32 %v73, 7
    %v75 = vsub.s32 %v72, %v74
    %v76 = vrot.slane %v68, %v75
    %v77 = vcombine.high %v76, %v76
    %v80 = vsel %vm33, %v76, 0.0
    %v81 = vsel %vm33, %v77, 0.0
    %v82 = vadd.f32 %v80, %v81
    %83 = vadd.xlane.f32.xlu0 %v82
    %v84 = vpop.xlane.xlu0 %83
    %v85 = vmul.f32 %v84, 0.00390625
    %v86 = vmul.f32 %v50, %v50
    %v89 = vunpack.c.l.s4 1983009808
    %v90 = vunpack.c.0.s8 %v89
    %v91 = vlaneseq
    %v92 = vshrl.u32 %v91, 7
    %v93 = vsub.s32 %v90, %v92
    %v94 = vrot.slane %v86, %v93
    %v95 = vcombine.high %v94, %v94
    %v98 = vsel %vm33, %v94, 0.0
    %v99 = vsel %vm33, %v95, 0.0
    %v100 = vadd.f32 %v98, %v99
    %101 = vadd.xlane.f32.xlu0 %v100
    %v102 = vpop.xlane.xlu0 %101
    %v103 = vmul.f32 %v102, 0.00390625
    %vm104 = vcmask 7168
    %v105 = vsel %vm104, %v39, %v67
    %vm106 = vcmask 15360
    %v107 = vsel %vm106, %v105, %v85
    %vm108 = vcmask 23552
    %v109 = vsel %vm108, %v107, %v103
    %vm110 = vcmask 25600
    %111 = vst.msk [vmem:[#allocation5] sm:$0x3] %vm110, %v109
    // Predicated region
    $region10: #{tpu_custom_call.1} parent=1 // pred_check
      _
    $region11: #{tpu_custom_call.1} parent=1 // pred_check_branch
      %113 = sbr.rel (0) target = $region13
    $region12: #{tpu_custom_call.1} parent=1 // pred_region
      %s115 = ssub.s32 32, 32
      %116 = vsyncadd [#allocation4], %s115
      %s118 = sshll.u32 [#allocation5], 4
      %s119 = int_to_ptr.vmem [resolvable:$true] %s118
      %121 = dma.vmem_to_hbm [thread:$0]  %s119, 32, %s1, [#allocation4]
    $region13: #{tpu_custom_call.1} parent=1 // pred_fallthru
      _
    // Predicated region
    $region14: #{tpu_custom_call.1} parent=1 // pred_check
      _
    $region15: #{tpu_custom_call.1} parent=1 // pred_check_branch
      %123 = sbr.rel (0) target = $region17
    $region16: #{tpu_custom_call.1} parent=1 // pred_region
      %124 = dma.done [#allocation4], 32
    $region17: #{tpu_custom_call.1} parent=1 // pred_fallthru
      _
    %125 = vsyncpa [#allocation3], 1
    %126 = vsyncpa [#allocation4], 1

</llo_original>
